<compile_context>
chip_gen: v7x
topology: tpu7x:2x2x1
jax: 0.10.0
libtpu: 0.0.40
codegen_flags: <defaults>
</compile_context>

<pallas_src>
import functools

import jax
import jax.numpy as jnp
from jax.experimental import pallas as pl
from jax.experimental.pallas import tpu as pltpu


def _round_up(n, m):
    return ((n + m - 1) // m) * m


# ----------------------------- Pallas kernel ------------------------------ #
def simmim_kernel(x_ref, m_ref, w_ref, b_ref, tok_rec_ref, out_ref, *,
                  tm, d, d_out):
    x = x_ref[...]                         # (TM, D) f32 patch rows
    masked = m_ref[...] != 0.0             # (TM, 1) bool (mask is exactly 0/1)

    # Fused (encoder patch-embed ∘ 1x1-conv decoder): one bf16 MXU matmul,
    # f32 accumulation.  PixelShuffle is implicit in the (c, pi, pj) layout.
    dense_rec = jnp.dot(x.astype(jnp.bfloat16), w_ref[...],
                        preferred_element_type=jnp.float32) + b_ref[...]

    # Mask-token branch: decoder(mask_token) is the precomputed constant
    # tok_rec; the select commutes row-wise through the linear decoder, so
    # applying it after the matmul is exact.
    x_rec = jnp.where(masked, tok_rec_ref[...], dense_rec)       # (TM, D)

    # Masked L1: select (0/1 mask) + pure-VPU sublane fold to a lane-dense
    # partial.  The final cross-lane reduce and the mask-count denominator
    # happen once in JAX after the call (no XLU scalar reduce per step, no
    # shared accumulator -> grid axis stays "parallel").
    l1 = jnp.where(masked, jnp.abs(x - x_rec), 0.0)              # (TM, D)
    partial = jnp.sum(l1.reshape(tm // 8, 8, d), axis=0)         # (8, D)

    # Pad the small per-tile partial to 128 lanes so the store is an
    # unmasked, lane-dense vst.
    out_ref[...] = jnp.concatenate(
        [partial, jnp.zeros((8, d_out - d), jnp.float32)], axis=1)


# ------------------------------ host wrapper ------------------------------ #
@functools.partial(jax.jit, static_argnames=("patch_size", "tm"))
def simmim_forward(x, mask, params, *, patch_size, tm=2048):
    """x: (B, C, H, W) f32 NCHW; mask: (B, H//P, W//P) in {0,1}."""
    B, C, H, W = x.shape
    P = patch_size
    Hp, Wp = H // P, W // P
    Np = Hp * Wp
    D = C * P * P
    F_ = params["w_enc"].shape[1]
    D2 = params["w_dec"].shape[1]
    assert D2 == D, "decoder must reconstruct the input patches"

    rows = B * Np
    rows8 = _round_up(rows, 8)

    # Row tile: as big as requested (VMEM use is tiny: tm*D*4 ≈ 384 KiB at
    # tm=2048, well inside even v7x's 64 MiB), but keep at least 2 grid steps
    # so the "parallel" axis feeds both v7x TensorCores.
    tm = min(tm, rows8)
    if pl.cdiv(rows8, tm) < 2 and rows8 >= 16:
        tm = _round_up(pl.cdiv(rows8, 2), 8)
    G = pl.cdiv(rows8, tm)
    rows_pad = G * tm

    # Patchify: NCHW -> (B*Np, D) with d = (c, pi, pj).  Rows are zero-padded
    # (padded rows have mask=0 so they contribute nothing), lanes are NOT
    # padded (D=48 stays 48 in HBM).
    # TODO(synk): extract patches inside the kernel (BlockSpec over NCHW row
    # slabs + in-kernel reorder) to avoid materializing this copy of x in HBM.
    x_p = (x.reshape(B, C, Hp, P, Wp, P)
             .transpose(0, 2, 4, 1, 3, 5)
             .reshape(rows, D))
    x_p = jnp.pad(x_p, ((0, rows_pad - rows), (0, 0)))
    m = jnp.pad(mask.reshape(rows, 1).astype(jnp.float32),
                ((0, rows_pad - rows), (0, 0)))

    # Fuse the two linear stages host-side (f32 math; matmul operand in bf16).
    # The fused matmul's output only matters for unmasked rows (which the loss
    # zeroes), so its bf16 precision never touches the loss value.
    w_fused = jnp.dot(params["w_enc"], params["w_dec"]).astype(jnp.bfloat16)   # (D, D)
    b_fused = jnp.dot(params["b_enc"], params["w_dec"]) + params["b_dec"]      # (1, D)
    tok_rec = jnp.dot(params["mask_token"], params["w_dec"]) + params["b_dec"] # (1, D)

    d_out = _round_up(D, 128)   # lane-dense partial-output width

    kernel = functools.partial(simmim_kernel, tm=tm, d=D, d_out=d_out)
    partials = pl.pallas_call(
        kernel,
        out_shape=jax.ShapeDtypeStruct((G * 8, d_out), jnp.float32),
        grid_spec=pltpu.PrefetchScalarGridSpec(
            num_scalar_prefetch=0,
            grid=(G,),
            in_specs=[
                pl.BlockSpec((tm, D), lambda i: (i, 0)),   # x patches (48 lanes)
                pl.BlockSpec((tm, 1), lambda i: (i, 0)),   # patch mask
                pl.BlockSpec((D, D), lambda i: (0, 0)),    # fused weight (bf16)
                pl.BlockSpec((1, D), lambda i: (0, 0)),    # fused bias
                pl.BlockSpec((1, D), lambda i: (0, 0)),    # decoded mask token
            ],
            out_specs=pl.BlockSpec((8, d_out), lambda i: (i, 0)),
        ),
        compiler_params=pltpu.CompilerParams(
            dimension_semantics=("parallel",)),   # no shared accumulator
    )(x_p, m, w_fused, b_fused, tok_rec)

    num = partials.sum()                          # one final reduce in JAX
    # mask.repeat_interleave(P,1).repeat_interleave(P,2).sum() == P*P*mask.sum()
    den = mask.astype(jnp.float32).sum() * float(P * P) + 1e-5
    return num / den / C


# --------------------- pure-JAX NCHW reference (check) --------------------- #
def simmim_ref_nchw(x, mask, params, patch_size):
    """Full f32 NCHW conv + PixelShuffle reference (un-fused, two stages)."""
    B, C, H, W = x.shape
    P = patch_size
    Hp, Wp = H // P, W // P
    F_ = params["w_enc"].shape[1]
    D2 = params["w_dec"].shape[1]
    # encoder: Conv2d(C, F, kernel=P, stride=P) + bias, then mask-token sub
    w_conv = params["w_enc"].T.reshape(F_, C, P, P)
    z = jax.lax.conv_general_dilated(
        x, w_conv, (P, P), "VALID",
        dimension_numbers=("NCHW", "OIHW", "NCHW"))
    z = z + params["b_enc"].reshape(1, -1, 1, 1)
    m = mask.reshape(B, 1, Hp, Wp).astype(jnp.float32)
    z = jnp.where(m != 0.0, params["mask_token"].reshape(1, -1, 1, 1), z)
    # decoder: Conv2d(F, P*P*C, kernel=1) + PixelShuffle(P)
    w_dec_conv = params["w_dec"].T.reshape(D2, F_, 1, 1)
    y = jax.lax.conv_general_dilated(
        z, w_dec_conv, (1, 1), "VALID",
        dimension_numbers=("NCHW", "OIHW", "NCHW"))
    y = y + params["b_dec"].reshape(1, -1, 1, 1)
    c_out = D2 // (P * P)
    y = (y.reshape(B, c_out, P, P, Hp, Wp)
           .transpose(0, 1, 4, 2, 5, 3)
           .reshape(B, c_out, H, W))
    mexp = jnp.repeat(jnp.repeat(mask.astype(jnp.float32), P, axis=1),
                      P, axis=2)[:, None]
    l1 = jnp.abs(x - y)
    return (l1 * mexp).sum() / (mexp.sum() + 1e-5) / C


# ----------------------------------- main ---------------------------------- #
if __name__ == "__main__":
    # Small shapes consistent with the module: in_chans must be 3 (decoder
    # emits encoder_stride**2 * 3 channels); encoder_stride == patch_size.
    B, C, H, W = 2, 3, 16, 16
    P = 4                      # patch_size == encoder_stride
    F_ = 32                    # encoder.num_features
    D = C * P * P              # 48
    D2 = P * P * C             # 48 (== encoder_stride**2 * 3 with in_chans=3)

    key = jax.random.PRNGKey(0)
    kx, km, k1, k2, k3, k4 = jax.random.split(key, 6)

    x = jax.random.normal(kx, (B, C, H, W), dtype=jnp.float32)
    mask = (jax.random.uniform(km, (B, H // P, W // P)) < 0.5).astype(jnp.float32)

    params = {
        "w_enc": 0.02 * jax.random.normal(k1, (D, F_), dtype=jnp.float32),
        "b_enc": jnp.zeros((1, F_), dtype=jnp.float32),
        "mask_token": 0.02 * jax.random.normal(k2, (1, F_), dtype=jnp.float32),
        "w_dec": 0.02 * jax.random.normal(k3, (F_, D2), dtype=jnp.float32),
        "b_dec": 0.01 * jax.random.normal(k4, (1, D2), dtype=jnp.float32),
    }

    loss = jax.block_until_ready(simmim_forward(x, mask, params, patch_size=P))
    ref = jax.block_until_ready(simmim_ref_nchw(x, mask, params, P))

    assert jnp.isfinite(loss), "kernel produced non-finite loss"
    assert jnp.allclose(loss, ref, rtol=1e-4, atol=1e-5), (loss, ref)
    print("KERNEL_OK")
</pallas_src>

<mosaic_0001>
module attributes {stable_mosaic.version = 11 : i64} {
  func.func @simmim_kernel(%arg0: i32, %arg1: memref<16x48xf32, #tpu.memory_space<vmem>>, %arg2: memref<16x1xf32, #tpu.memory_space<vmem>>, %arg3: memref<48x48xbf16, #tpu.memory_space<vmem>>, %arg4: memref<1x48xf32, #tpu.memory_space<vmem>>, %arg5: memref<1x48xf32, #tpu.memory_space<vmem>>, %arg6: memref<8x128xf32, #tpu.memory_space<vmem>>) attributes {dimension_semantics = [#tpu.dimension_semantics<parallel>], iteration_bounds = array<i64: 2>, scalar_prefetch = 0 : i64, scratch_operands = 0 : i64, tpu.core_type = #tpu.core_type<tc>, window_params = [{transform_indices = @transform_0, window_bounds = array<i64: 16, 48>}, {transform_indices = @transform_1, window_bounds = array<i64: 16, 1>}, {pipeline_mode = #tpu.pipeline_mode<synchronous>, transform_indices = @transform_2, window_bounds = array<i64: 48, 48>}, {pipeline_mode = #tpu.pipeline_mode<synchronous>, transform_indices = @transform_3, window_bounds = array<i64: 1, 48>}, {pipeline_mode = #tpu.pipeline_mode<synchronous>, transform_indices = @transform_4, window_bounds = array<i64: 1, 48>}, {transform_indices = @transform_5, window_bounds = array<i64: 8, 128>}]} {
    %c0 = arith.constant 0 : index
    %c0_0 = arith.constant 0 : index
    %0 = vector.load %arg1[%c0, %c0_0] : memref<16x48xf32, #tpu.memory_space<vmem>>, vector<16x48xf32>
    %c0_1 = arith.constant 0 : index
    %c0_2 = arith.constant 0 : index
    %1 = vector.load %arg2[%c0_1, %c0_2] : memref<16x1xf32, #tpu.memory_space<vmem>>, vector<16x1xf32>
    %cst = arith.constant 0.000000e+00 : f32
    %2 = vector.broadcast %cst : f32 to vector<16x1xf32>
    %3 = arith.cmpf one, %1, %2 : vector<16x1xf32>
    %4 = arith.truncf %0 : vector<16x48xf32> to vector<16x48xbf16>
    %c0_3 = arith.constant 0 : index
    %c0_4 = arith.constant 0 : index
    %5 = vector.load %arg3[%c0_3, %c0_4] : memref<48x48xbf16, #tpu.memory_space<vmem>>, vector<48x48xbf16>
    %cst_5 = arith.constant dense<0.000000e+00> : vector<16x48xf32>
    %6 = tpu.matmul %4, %5, %cst_5 {dimension_numbers = #tpu.dot_dimension_numbers<[1], [0], [0], [1], [0, 0, 1, 1], [], []>} : vector<16x48xbf16>, vector<48x48xbf16>, vector<16x48xf32> -> vector<16x48xf32>
    %c0_6 = arith.constant 0 : index
    %c0_7 = arith.constant 0 : index
    %7 = vector.load %arg4[%c0_6, %c0_7] : memref<1x48xf32, #tpu.memory_space<vmem>>, vector<1x48xf32>
    %8 = vector.broadcast %7 : vector<1x48xf32> to vector<16x48xf32>
    %9 = arith.addf %6, %8 : vector<16x48xf32>
    %c0_8 = arith.constant 0 : index
    %c0_9 = arith.constant 0 : index
    %10 = vector.load %arg5[%c0_8, %c0_9] : memref<1x48xf32, #tpu.memory_space<vmem>>, vector<1x48xf32>
    %11 = vector.shape_cast %3 : vector<16x1xi1> to vector<16x1xi1>
    %12 = vector.broadcast %11 : vector<16x1xi1> to vector<16x48xi1>
    %13 = vector.shape_cast %10 : vector<1x48xf32> to vector<1x48xf32>
    %14 = vector.broadcast %13 : vector<1x48xf32> to vector<16x48xf32>
    %15 = arith.select %12, %14, %9 : vector<16x48xi1>, vector<16x48xf32>
    %16 = arith.subf %0, %15 : vector<16x48xf32>
    %17 = math.absf %16 : vector<16x48xf32>
    %cst_10 = arith.constant 0.000000e+00 : f32
    %18 = vector.shape_cast %3 : vector<16x1xi1> to vector<16x1xi1>
    %19 = vector.broadcast %18 : vector<16x1xi1> to vector<16x48xi1>
    %20 = vector.broadcast %cst_10 : f32 to vector<16x48xf32>
    %21 = arith.select %19, %17, %20 : vector<16x48xi1>, vector<16x48xf32>
    %22 = vector.shape_cast %21 : vector<16x48xf32> to vector<2x8x48xf32>
    %cst_11 = arith.constant dense<0.000000e+00> : vector<8x48xf32>
    %23 = vector.multi_reduction <add>, %22, %cst_11 [0] : vector<2x8x48xf32> to vector<8x48xf32>
    %cst_12 = arith.constant 0.000000e+00 : f32
    %24 = vector.broadcast %cst_12 : f32 to vector<8x80xf32>
    %25 = tpu.concatenate %23, %24 in 1 : vector<8x48xf32>, vector<8x80xf32> -> vector<8x128xf32>
    %c0_13 = arith.constant 0 : index
    %c0_14 = arith.constant 0 : index
    %26 = vector.load %arg6[%c0_13, %c0_14] : memref<8x128xf32, #tpu.memory_space<vmem>>, vector<8x128xf32>
    tpu.vector_store %arg6[%c0_13, %c0_14], %25 {strides = array<i32>} : memref<8x128xf32, #tpu.memory_space<vmem>>, vector<8x128xf32>,
    return
  }
  func.func @transform_0(%arg0: i32) -> (i32, i32) {
    %c0_i32 = arith.constant 0 : i32
    %c0_i32_0 = arith.constant 0 : i32
    return %arg0, %c0_i32 : i32, i32
  }
  func.func @transform_1(%arg0: i32) -> (i32, i32) {
    %c0_i32 = arith.constant 0 : i32
    %c0_i32_0 = arith.constant 0 : i32
    return %arg0, %c0_i32 : i32, i32
  }
  func.func @transform_2(%arg0: i32) -> (i32, i32) {
    %c0_i32 = arith.constant 0 : i32
    %c0_i32_0 = arith.constant 0 : i32
    %c0_i32_1 = arith.constant 0 : i32
    return %c0_i32, %c0_i32_0 : i32, i32
  }
  func.func @transform_3(%arg0: i32) -> (i32, i32) {
    %c0_i32 = arith.constant 0 : i32
    %c0_i32_0 = arith.constant 0 : i32
    %c0_i32_1 = arith.constant 0 : i32
    return %c0_i32, %c0_i32_0 : i32, i32
  }
  func.func @transform_4(%arg0: i32) -> (i32, i32) {
    %c0_i32 = arith.constant 0 : i32
    %c0_i32_0 = arith.constant 0 : i32
    %c0_i32_1 = arith.constant 0 : i32
    return %c0_i32, %c0_i32_0 : i32, i32
  }
  func.func @transform_5(%arg0: i32) -> (i32, i32) {
    %c0_i32 = arith.constant 0 : i32
    %c0_i32_0 = arith.constant 0 : i32
    return %arg0, %c0_i32 : i32, i32
  }
}

</mosaic_0001>

<llo_original>
// kernel: simmim_forward.1
$region0: #{simmim_forward.1}
  #allocation0 [shape = 'u32[]', space=smem, size = 0x4, offset = 0x4, fixed_abs, tag = 'smem constant byte address 0x4 - core index']
  #allocation1 [shape = 'u32[144,128]{1,0:T(1,128)}', space=vmem, size = 0x12000, scoped, tag = 'internal scratch']
  %s0 = inlined_call_operand.vmem [shape: f32[32,48], index: 0, kind: input, shape index: {}]
  %s1 = inlined_call_operand.vmem [shape: f32[32,1], index: 1, kind: input, shape index: {}]
  %s2 = inlined_call_operand.vmem [shape: bf16[48,48], index: 2, kind: input, shape index: {}]
  %s3 = inlined_call_operand.vmem [shape: f32[1,48], index: 3, kind: input, shape index: {}]
  %s4 = inlined_call_operand.vmem [shape: f32[1,48], index: 4, kind: input, shape index: {}]
  %s5 = inlined_call_operand.vmem [shape: f32[16,128], index: 5, kind: output, shape index: {}]
  %s6 = sld [smem:[#allocation0]]
  $region53: #{simmim_forward.1} parent=0
    _
  %s8 = ssub.s32 1, %s6
  %s9 = scalar_select 0, %s8, %s6
  loop: start=0, step=1, limit=4
  $region2: #{simmim_forward.1} parent=0 // loop_pre_header
    _
  $region3: #{simmim_forward.1} parent=0 // loop_header
    %s11 = sphi 0, %s15
    %p12 = scmp.ge.s32.totalorder %s11, 4
    %s21 = sphi 0, %s23
    %s24 = sphi 0, %s21
    %s25 = sphi 0, %s24
    %s41 = sphi 0, %s25
    %s47 = sphi 0, %s49
    %s50 = sphi 0, %s47
    %s51 = sphi 0, %s50
    %s67 = sphi 0, %s51
    %s71 = sphi 0, %s71
    %s73 = sphi 0, %s71
    %s74 = sphi 0, %s73
    %s88 = sphi 0, %s74
    %s92 = sphi 0, %s92
    %s94 = sphi 0, %s92
    %s95 = sphi 0, %s94
    %s109 = sphi 0, %s95
    %s113 = sphi 0, %s113
    %s115 = sphi 0, %s113
    %s116 = sphi 0, %s115
    %s130 = sphi 0, %s116
    %s136 = sphi 0, %s138
    %s139 = sphi 0, %s136
    %s140 = sphi 0, %s139
    %s156 = sphi 0, %s140
  $region4: #{simmim_forward.1} parent=0 // loop_header_branch
    %14 = sbr.rel (%p12) target = $region8
  $region5: #{simmim_forward.1} parent=0 // loop_body
    %s16 = ssub.s32 %s11, 1
    %s17 = ssub.s32 %s11, 2
    %s18 = sadd.s32 %s11, 1
    %s19 = ssub.s32 %s11, %s18
    %p20 = scmp.eq.s32.totalorder %s19, 0
    %s22 = sadd.s32 %s21, 1
    %s23 = scalar_select %p20, %s21, %s22
    %p26 = pneg %p20
    %p27 = scmp.eq.s32.totalorder %s11, 1
    %p28 = por %p26, %p27
    %p29 = scmp.ne.s32.totalorder %s21, %s24
    %p30 = scmp.eq.s32.totalorder %s11, 0
    %p31 = por %p29, %p30
    %p32 = scmp.ne.s32.totalorder %s21, %s24
    %p33 = scmp.eq.s32.totalorder %s16, 1
    %p34 = por %p32, %p33
    %p35 = scmp.ne.s32.totalorder %s24, %s25
    %p36 = scmp.eq.s32.totalorder %s16, 0
    %p37 = por %p35, %p36
    %p38 = scmp.ne.s32.totalorder %s24, %s25
    %p39 = scmp.eq.s32.totalorder %s17, 1
    %p40 = por %p38, %p39
    %p42 = scmp.ne.s32.totalorder %s25, %s41
    %p43 = scmp.eq.s32.totalorder %s17, 0
    %p44 = por %p42, %p43
    %s45 = ssub.s32 %s11, %s18
    %p46 = scmp.eq.s32.totalorder %s45, 0
    %s48 = sadd.s32 %s47, 1
    %s49 = scalar_select %p46, %s47, %s48
    %p52 = pneg %p46
    %p53 = scmp.eq.s32.totalorder %s11, 1
    %p54 = por %p52, %p53
    %p55 = scmp.ne.s32.totalorder %s47, %s50
    %p56 = scmp.eq.s32.totalorder %s11, 0
    %p57 = por %p55, %p56
    %p58 = scmp.ne.s32.totalorder %s47, %s50
    %p59 = scmp.eq.s32.totalorder %s16, 1
    %p60 = por %p58, %p59
    %p61 = scmp.ne.s32.totalorder %s50, %s51
    %p62 = scmp.eq.s32.totalorder %s16, 0
    %p63 = por %p61, %p62
    %p64 = scmp.ne.s32.totalorder %s50, %s51
    %p65 = scmp.eq.s32.totalorder %s17, 1
    %p66 = por %p64, %p65
    %p68 = scmp.ne.s32.totalorder %s51, %s67
    %p69 = scmp.eq.s32.totalorder %s17, 0
    %p70 = por %p68, %p69
    %s72 = sadd.s32 %s71, 1
    %p75 = scmp.eq.s32.totalorder %s11, 1
    %p76 = scmp.ne.s32.totalorder %s71, %s73
    %p77 = scmp.eq.s32.totalorder %s11, 0
    %p78 = por %p76, %p77
    %p79 = scmp.ne.s32.totalorder %s71, %s73
    %p80 = scmp.eq.s32.totalorder %s16, 1
    %p81 = por %p79, %p80
    %p82 = scmp.ne.s32.totalorder %s73, %s74
    %p83 = scmp.eq.s32.totalorder %s16, 0
    %p84 = por %p82, %p83
    %p85 = scmp.ne.s32.totalorder %s73, %s74
    %p86 = scmp.eq.s32.totalorder %s17, 1
    %p87 = por %p85, %p86
    %p89 = scmp.ne.s32.totalorder %s74, %s88
    %p90 = scmp.eq.s32.totalorder %s17, 0
    %p91 = por %p89, %p90
    %s93 = sadd.s32 %s92, 1
    %p96 = scmp.eq.s32.totalorder %s11, 1
    %p97 = scmp.ne.s32.totalorder %s92, %s94
    %p98 = scmp.eq.s32.totalorder %s11, 0
    %p99 = por %p97, %p98
    %p100 = scmp.ne.s32.totalorder %s92, %s94
    %p101 = scmp.eq.s32.totalorder %s16, 1
    %p102 = por %p100, %p101
    %p103 = scmp.ne.s32.totalorder %s94, %s95
    %p104 = scmp.eq.s32.totalorder %s16, 0
    %p105 = por %p103, %p104
    %p106 = scmp.ne.s32.totalorder %s94, %s95
    %p107 = scmp.eq.s32.totalorder %s17, 1
    %p108 = por %p106, %p107
    %p110 = scmp.ne.s32.totalorder %s95, %s109
    %p111 = scmp.eq.s32.totalorder %s17, 0
    %p112 = por %p110, %p111
    %s114 = sadd.s32 %s113, 1
    %p117 = scmp.eq.s32.totalorder %s11, 1
    %p118 = scmp.ne.s32.totalorder %s113, %s115
    %p119 = scmp.eq.s32.totalorder %s11, 0
    %p120 = por %p118, %p119
    %p121 = scmp.ne.s32.totalorder %s113, %s115
    %p122 = scmp.eq.s32.totalorder %s16, 1
    %p123 = por %p121, %p122
    %p124 = scmp.ne.s32.totalorder %s115, %s116
    %p125 = scmp.eq.s32.totalorder %s16, 0
    %p126 = por %p124, %p125
    %p127 = scmp.ne.s32.totalorder %s115, %s116
    %p128 = scmp.eq.s32.totalorder %s17, 1
    %p129 = por %p127, %p128
    %p131 = scmp.ne.s32.totalorder %s116, %s130
    %p132 = scmp.eq.s32.totalorder %s17, 0
    %p133 = por %p131, %p132
    %s134 = ssub.s32 %s11, %s18
    %p135 = scmp.eq.s32.totalorder %s134, 0
    %s137 = sadd.s32 %s136, 1
    %s138 = scalar_select %p135, %s136, %s137
    %p141 = pneg %p135
    %p142 = scmp.eq.s32.totalorder %s11, 1
    %p143 = por %p141, %p142
    %p144 = scmp.ne.s32.totalorder %s136, %s139
    %p145 = scmp.eq.s32.totalorder %s11, 0
    %p146 = por %p144, %p145
    %p147 = scmp.ne.s32.totalorder %s136, %s139
    %p148 = scmp.eq.s32.totalorder %s16, 1
    %p149 = por %p147, %p148
    %p150 = scmp.ne.s32.totalorder %s139, %s140
    %p151 = scmp.eq.s32.totalorder %s16, 0
    %p152 = por %p150, %p151
    %p153 = scmp.ne.s32.totalorder %s139, %s140
    %p154 = scmp.eq.s32.totalorder %s17, 1
    %p155 = por %p153, %p154
    %p157 = scmp.ne.s32.totalorder %s140, %s156
    %p158 = scmp.eq.s32.totalorder %s17, 0
    %p159 = por %p157, %p158
    %p160 = scmp.le.s32.totalorder 1, %s11
    %p161 = scmp.lt.s32.totalorder %s11, 3
    %p162 = pnand %p160, %p161
    %p163 = pneg %p162
    // Predicated region
    $region9: #{simmim_forward.1} parent=5 // pred_check
      _
    $region10: #{simmim_forward.1} parent=5 // pred_check_branch
      %165 = sbr.rel (%p162) target = $region12
    $region11: #{simmim_forward.1} parent=5 // pred_region
      %s166 = ssub.s32 %s11, 1
      // Predicated region
      $region13: #{simmim_forward.1} parent=11 // pred_check
        %p167 = pneg %p84
      $region14: #{simmim_forward.1} parent=11 // pred_check_branch
        %169 = sbr.rel (%p167) target = $region16
      $region15: #{simmim_forward.1} parent=11 // pred_region
        _
      $region16: #{simmim_forward.1} parent=11 // pred_fallthru
        _
      // Predicated region
      $region17: #{simmim_forward.1} parent=11 // pred_check
        %p170 = pneg %p105
      $region18: #{simmim_forward.1} parent=11 // pred_check_branch
        %172 = sbr.rel (%p170) target = $region20
      $region19: #{simmim_forward.1} parent=11 // pred_region
        _
      $region20: #{simmim_forward.1} parent=11 // pred_fallthru
        _
      // Predicated region
      $region21: #{simmim_forward.1} parent=11 // pred_check
        %p173 = pneg %p126
      $region22: #{simmim_forward.1} parent=11 // pred_check_branch
        %175 = sbr.rel (%p173) target = $region24
      $region23: #{simmim_forward.1} parent=11 // pred_region
        _
      $region24: #{simmim_forward.1} parent=11 // pred_fallthru
        _
    $region12: #{simmim_forward.1} parent=5 // pred_fallthru
      _
    %p176 = scmp.lt.s32.totalorder %s11, 2
    // Predicated region
    $region25: #{simmim_forward.1} parent=5 // pred_check
      %p177 = pneg %p176
    $region26: #{simmim_forward.1} parent=5 // pred_check_branch
      %179 = sbr.rel (%p177) target = $region28
    $region27: #{simmim_forward.1} parent=5 // pred_region
      // Predicated region
      $region29: #{simmim_forward.1} parent=27 // pred_check
        %p180 = pneg %p31
      $region30: #{simmim_forward.1} parent=27 // pred_check_branch
        %182 = sbr.rel (%p180) target = $region32
      $region31: #{simmim_forward.1} parent=27 // pred_region
        %s183 = smul.u32 2, %s11
        %p184 = scmp.lt.s32.totalorder %s183, 3
        %s185 = scalar_select %p184, %s183, 3
        %s186 = smul.addr %s185, 8
        %s187 = scalar_lea.vmem %s0, %s186
        %s188 = smul.u32 2, %s11
      $region32: #{simmim_forward.1} parent=27 // pred_fallthru
        _
      // Predicated region
      $region33: #{simmim_forward.1} parent=27 // pred_check
        %p189 = pneg %p57
      $region34: #{simmim_forward.1} parent=27 // pred_check_branch
        %191 = sbr.rel (%p189) target = $region36
      $region35: #{simmim_forward.1} parent=27 // pred_region
        %s192 = smul.u32 2, %s11
        %p193 = scmp.lt.s32.totalorder %s192, 3
        %s194 = scalar_select %p193, %s192, 3
        %s195 = smul.addr %s194, 8
        %s196 = scalar_lea.vmem %s1, %s195
        %s197 = smul.u32 2, %s11
      $region36: #{simmim_forward.1} parent=27 // pred_fallthru
        _
    $region28: #{simmim_forward.1} parent=5 // pred_fallthru
      _
    %p198 = scmp.le.s32.totalorder 1, %s11
    %p199 = scmp.lt.s32.totalorder %s11, 3
    %p200 = pnand %p198, %p199
    %p201 = pneg %p200
    // Predicated region
    $region37: #{simmim_forward.1} parent=5 // pred_check
      _
    $region38: #{simmim_forward.1} parent=5 // pred_check_branch
      %203 = sbr.rel (%p200) target = $region40
    $region39: #{simmim_forward.1} parent=5 // pred_region
      %s204 = ssub.s32 %s11, 1
      %s205 = smul.u32 2, %s16
      %p206 = scmp.lt.s32.totalorder %s205, 3
      %s207 = scalar_select %p206, %s205, 3
      %s208 = smul.addr %s207, 8
      %s209 = scalar_lea.vmem %s0, %s208
      %p210 = pneg %p37
      %p211 = pneg %p34
      %s212 = smul.u32 2, %s16
      %p213 = scmp.lt.s32.totalorder %s212, 3
      %s214 = scalar_select %p213, %s212, 3
      %s215 = smul.addr %s214, 8
      %s216 = scalar_lea.vmem %s1, %s215
      %p217 = pneg %p63
      %p218 = pneg %p60
      %p219 = pneg %p84
      %p220 = pneg %p81
      %p221 = pneg %p105
      %p222 = pneg %p102
      %p223 = pneg %p126
      %p224 = pneg %p123
      %p225 = pneg %p152
      %p226 = pneg %p149
      %p227 = scmp.lt.s32.totalorder %s16, 1
      %s228 = scalar_select %p227, %s16, 1
      %s229 = smul.addr %s228, 8
      %s230 = scalar_lea.vmem %s5, %s229
      %s231 = smul.u32 2, %s16
      %p232 = scmp.lt.s32.totalorder %s231, 3
      %s233 = scalar_select %p232, %s231, 3
      %s234 = smul.addr %s233, 8
      %s235 = scalar_lea.vmem %s0, %s234
      %s236 = smul.u32 2, %s16
      %s237 = smul.u32 2, %s16
      %p238 = scmp.lt.s32.totalorder %s237, 3
      %s239 = scalar_select %p238, %s237, 3
      %s240 = smul.addr %s239, 8
      %s241 = scalar_lea.vmem %s1, %s240
      %s242 = smul.u32 2, %s16
      %p243 = scmp.lt.s32.totalorder %s16, 1
      %s244 = scalar_select %p243, %s16, 1
      %s245 = smul.addr %s244, 8
      %s246 = scalar_lea.vmem %s5, %s245
      %v248 = vld [vmem:[%s235] sm:$0xff]
      %v249 = vld [vmem:[%s235 + $0x8] sm:$0xff]
      %v250 = vld [vmem:[%s241] sm:$0xff]
      %v251 = vld [vmem:[%s241 + $0x8] sm:$0xff]
      %vm252 = vcmp.ne.f32.partialorder %v250, 0.0
      %vm253 = vcmp.ne.f32.partialorder %v251, 0.0
      %v254 = vpack.c.bf16 %v249, %v248
      %v255 = vld [vmem:[%s2] sm:$0xf]
      %v256 = vld [vmem:[%s2 + $0x4] sm:$0xf]
      %v257 = vld [vmem:[%s2 + $0x8] sm:$0xf]
      %v258 = vld [vmem:[%s2 + $0xc] sm:$0xf]
      %v259 = vld [vmem:[%s2 + $0x10] sm:$0xf]
      %v260 = vld [vmem:[%s2 + $0x14] sm:$0xf]
      %v261 = vld [vmem:[%s3] sm:$0x1]
      %v263 = vlaneseq
      %v264 = vshrl.u32 %v263, 7
      %v265 = vsub.s32 0, %v264
      %v266 = vrot.slane %v261, %v265
      %v274 = vunpack.c.l.b16 %v255
      %v275 = vunpack.c.l.b16 %v256
      %v276 = vunpack.c.l.b16 %v257
      %v277 = vunpack.c.l.b16 %v258
      %v278 = vunpack.c.l.b16 %v259
      %v279 = vunpack.c.l.b16 %v260
      %v280 = vpack.c.b16 %v275, %v274
      %v281 = vpack.c.b16 %v277, %v276
      %v282 = vpack.c.b16 %v279, %v278
      %vm286 = vcmask 392192
      %v288 = vsel %vm286, %v254, 0
      %290 = vmatprep.subr.bf16.mxu0 0
      %291 = vmatpush1.bf16.msra.mxu0 %v280
      %292 = vmatprep.subr.bf16.mxu0 0
      %293 = vmatpush1.bf16.msra.mxu0 %v281
      %294 = vmatprep.subr.bf16.mxu0 0
      %295 = vmatpush1.bf16.msra.mxu0 %v282
      %296 = vmatprep.subr.bf16.mxu0 0
      %297 = vmatpush1.bf16.msra.mxu0 0
      %298 = vmatprep.subr.bf16.mxu0 0
      %299 = vmatpush1.bf16.msra.mxu0 0
      %300 = vmatprep.subr.bf16.mxu0 0
      %301 = vmatpush1.bf16.msra.mxu0 0
      %302 = vmatprep.subr.bf16.mxu0 0
      %303 = vmatpush1.bf16.msra.mxu0 0
      %304 = vmatprep.subr.bf16.mxu0 0
      %305 = vmatpush1.bf16.msra.mxu0 0
      %306 = vmatprep.subr.bf16.mxu0 0
      %307 = vmatpush1.bf16.msra.mxu0 0
      %308 = vmatprep.subr.bf16.mxu0 0
      %309 = vmatpush1.bf16.msra.mxu0 0
      %310 = vmatprep.subr.bf16.mxu0 0
      %311 = vmatpush1.bf16.msra.mxu0 0
      %312 = vmatprep.subr.bf16.mxu0 0
      %313 = vmatpush1.bf16.msra.mxu0 0
      %314 = vmatprep.subr.bf16.mxu0 0
      %315 = vmatpush1.bf16.msra.mxu0 0
      %316 = vmatprep.subr.bf16.mxu0 0
      %317 = vmatpush1.bf16.msra.mxu0 0
      %318 = vmatprep.subr.bf16.mxu0 0
      %319 = vmatpush1.bf16.msra.mxu0 0
      %320 = vmatprep.subr.bf16.mxu0 0
      %321 = vmatpush1.bf16.msra.mxu0 0
      %322 = vmatprep.mubr.bf16.mxu0 0
      %323 = vmatmul.mubr.bf16.gmra.mrb[0].mxu0 %v288
      %v324 = vpop.f32.mrb[0].mxu0
      %v325 = vadd.f32 %v266, %v324
      %v326 = vpop.f32.mrb[0].mxu0
      %v327 = vpop.f32.mrb[0].mxu0
      %v328 = vadd.f32 %v266, %v327
      %v329 = vpop.f32.mrb[0].mxu0
      %330 = vdwg.mxu0
      %v331 = vld [vmem:[%s4] sm:$0x1]
      %v332 = vsel %vm252, 1, 0
      %v333 = vsel %vm253, 1, 0
      %334 = vset.pattern.permute.xlu0 0
      %335 = vperm.xlu0 %334, %v332
      %v336 = vpop.permute.xlu0 %335
      %337 = vset.pattern.permute.xlu0 0
      %338 = vperm.xlu0 %337, %v333
      %v339 = vpop.permute.xlu0 %338
      %vm340 = vcmp.eq.s32.totalorder %v336, 1
      %vm341 = vcmp.eq.s32.totalorder %v339, 1
      %v343 = vlaneseq
      %v344 = vshrl.u32 %v343, 7
      %v345 = vsub.s32 0, %v344
      %v346 = vrot.slane %v331, %v345
      %v348 = vsel %vm340, %v346, %v325
      %v349 = vsel %vm341, %v346, %v328
      %v350 = vsub.f32 %v248, %v348
      %v351 = vsub.f32 %v249, %v349
      %v352 = vand.u32 2147483647, %v350
      %v353 = vand.u32 2147483647, %v351
      %v354 = vsel %vm340, %v352, 0.0
      %v355 = vsel %vm341, %v353, 0.0
      %v356 = vsel %vm286, %v354, 0.0
      %v357 = vsel %vm286, %v355, 0.0
      %v358 = vadd.f32 %v356, %v357
      %v359 = vsel %vm286, %v358, 0.0
      %360 = vst [vmem:[%s246] sm:$0xff] %v359
      %p361 = scmp.lt.s32.totalorder %s16, 1
      %s362 = scalar_select %p361, %s16, 1
      %s363 = smul.addr %s362, 8
      %s364 = scalar_lea.vmem %s5, %s363
      // Predicated region
      $region41: #{simmim_forward.1} parent=39 // pred_check
        %p365 = pneg %p149
      $region42: #{simmim_forward.1} parent=39 // pred_check_branch
        %367 = sbr.rel (%p365) target = $region44
      $region43: #{simmim_forward.1} parent=39 // pred_region
        _
      $region44: #{simmim_forward.1} parent=39 // pred_fallthru
        _
    $region40: #{simmim_forward.1} parent=5 // pred_fallthru
      _
    %p368 = scmp.le.s32.totalorder 2, %s11
    // Predicated region
    $region45: #{simmim_forward.1} parent=5 // pred_check
      %p369 = pneg %p368
    $region46: #{simmim_forward.1} parent=5 // pred_check_branch
      %371 = sbr.rel (%p369) target = $region48
    $region47: #{simmim_forward.1} parent=5 // pred_region
      %s372 = ssub.s32 %s11, 2
      // Predicated region
      $region49: #{simmim_forward.1} parent=47 // pred_check
        %p373 = pneg %p155
      $region50: #{simmim_forward.1} parent=47 // pred_check_branch
        %375 = sbr.rel (%p373) target = $region52
      $region51: #{simmim_forward.1} parent=47 // pred_region
        %p376 = scmp.lt.s32.totalorder %s17, 1
        %s377 = scalar_select %p376, %s17, 1
        %s378 = smul.addr %s377, 8
        %s379 = scalar_lea.vmem %s5, %s378
      $region52: #{simmim_forward.1} parent=47 // pred_fallthru
        _
    $region48: #{simmim_forward.1} parent=5 // pred_fallthru
      _
  $region6: #{simmim_forward.1} parent=0 // loop_footer
    %s15 = sadd.s32 1, %s11
  $region7: #{simmim_forward.1} parent=0 // loop_footer_branch
    %10 = sbr.rel target = $region3
  $region8: #{simmim_forward.1} parent=0 // loop_exit
    _

</llo_original>
